<compile_context>
chip_gen: v7x
topology: tpu7x:2x2x1
jax: 0.10.0
libtpu: 0.0.40
codegen_flags: <defaults>
</compile_context>

<pallas_src>
import functools

import jax
import jax.numpy as jnp
from jax.experimental import pallas as pl
from jax.experimental.pallas import tpu as pltpu

_MiB = 1024 * 1024


def _cdiv(a, b):
    return -(-a // b)


def _round_up(x, m):
    return _cdiv(x, m) * m


def _triplet_kernel(a_ref, p_ref, n_ref, out_ref, row_acc_ref, acc_ref, *,
                    margin, batch, feat, block_rows, block_feat,
                    tiles_per_core, single_feat_tile, mask_rows, mask_cols):
    c = pl.program_id(0)   # core / parallel axis
    i = pl.program_id(1)   # row tiles handled by this core (reduction)
    j = pl.program_id(2)   # feature tiles (reduction)
    ni = pl.num_programs(1)
    nj = pl.num_programs(2)

    # Zero this core's scalar accumulator at the start of its slab.
    @pl.when((i == 0) & (j == 0))
    def _():
        acc_ref[...] = jnp.zeros_like(acc_ref)

    a = a_ref[...].astype(jnp.float32)
    p = p_ref[...].astype(jnp.float32)
    n = n_ref[...].astype(jnp.float32)

    # Fused per-row reduction: (a-p)^2 - (a-n)^2 summed once over features.
    diff = (a - p) ** 2 - (a - n) ** 2
    if mask_cols:
        col_ids = j * block_feat + jax.lax.broadcasted_iota(
            jnp.int32, (block_rows, block_feat), 1)
        diff = jnp.where(col_ids < feat, diff, 0.0)
    row = jnp.sum(diff, axis=1, keepdims=True)          # (block_rows, 1)

    if not single_feat_tile:
        @pl.when(j == 0)
        def _():
            row_acc_ref[...] = jnp.zeros_like(row_acc_ref)
        row_acc_ref[...] = row_acc_ref[...] + row

    # Last feature tile of this row tile: margin + relu + batch mask, fold
    # into the scalar accumulator.
    @pl.when(j == nj - 1)
    def _():
        row_total = row if single_feat_tile else row_acc_ref[...]
        losses = jnp.maximum(row_total + jnp.float32(margin), 0.0)
        if mask_rows:
            blk = c * tiles_per_core + i            # unclamped global tile id
            row_ids = blk * block_rows + jax.lax.broadcasted_iota(
                jnp.int32, (block_rows, 1), 0)
            losses = jnp.where(row_ids < batch, losses, 0.0)
        acc_ref[...] = acc_ref[...] + jnp.sum(losses)

    # Last step of this core's slab: publish the per-core partial sum.
    @pl.when((i == ni - 1) & (j == nj - 1))
    def _():
        out_ref[...] = jnp.full(out_ref.shape, acc_ref[0, 0], dtype=out_ref.dtype)


def _tpu_plan():
    """(num_cores, vmem_budget_bytes, vmem_limit_bytes) per TPU generation."""
    kind = ""
    try:
        kind = jax.devices()[0].device_kind.lower()
    except Exception:
        pass
    if "v7" in kind or "7x" in kind:
        return 2, 20 * _MiB, 28 * _MiB     # 2 TCs/chip, 64 MiB VMEM per TC
    if "v6" in kind:
        return 1, 24 * _MiB, 32 * _MiB     # 128 MiB physical / 32 MiB scoped
    if "v5p" in kind:
        return 1, 16 * _MiB, 24 * _MiB
    if "v5" in kind:                       # v5e / v5 lite: 16 MiB default scoped
        return 1, 12 * _MiB, 20 * _MiB
    return 1, 8 * _MiB, None               # unknown chip: conservative defaults


def _plan_tiles(batch, feat, itemsize, budget_bytes):
    """Pick (block_rows, block_feat) so 3 inputs x 2 pipeline buffers fit the
    VMEM budget, accounting for (sublane, 128-lane) layout padding."""
    sub = {4: 8, 2: 16, 1: 32}.get(itemsize, 8)       # packed sublane multiple
    lane_bytes = _round_up(feat, 128) * itemsize
    per_row = 3 * 2 * lane_bytes                      # 3 inputs x double buffer
    tb = (budget_bytes // per_row) // sub * sub
    if tb >= batch:
        return batch, feat                            # single full-extent row block
    if tb >= sub:
        return tb, feat
    # Feature-dim tiling fallback for very large feat: minimum rows, 128-col tiles.
    tb = sub
    per_128cols = 3 * 2 * tb * 128 * itemsize
    td = max(128, (budget_bytes // per_128cols) * 128)
    td = min(td, _round_up(feat, 128))
    return tb, td


def naive_triplet_loss(anchor, positive, negative, margin, size_average=True,
                       *, block_rows=None, block_feat=None, num_cores=None,
                       vmem_budget_bytes=None):
    """Pallas TPU implementation of NaiveTripletLoss.forward; returns a scalar.

    The kernel is HBM-bandwidth-bound: supply bf16 anchor/positive/negative to
    halve HBM traffic (~2x wall-clock); accumulation is always done in f32.
    """
    B, D = anchor.shape
    nc_default, budget_default, vmem_limit = _tpu_plan()
    nc = int(num_cores) if num_cores is not None else nc_default
    budget = int(vmem_budget_bytes) if vmem_budget_bytes is not None else budget_default
    if vmem_limit is not None:
        vmem_limit = max(vmem_limit, budget + 4 * _MiB)

    auto_rows, auto_feat = _plan_tiles(B, D, anchor.dtype.itemsize, budget)
    if block_rows is None:
        block_rows = auto_rows
    if block_feat is None:
        block_feat = auto_feat
    block_rows = int(min(block_rows, B))
    block_feat = int(min(block_feat, D))

    feat_tiles = _cdiv(D, block_feat)
    row_tiles = _cdiv(B, block_rows)
    nc = max(1, min(nc, row_tiles))
    tiles_per_core = _cdiv(row_tiles, nc)

    single_feat_tile = feat_tiles == 1
    mask_cols = feat_tiles * block_feat != D
    need_clamp = nc * tiles_per_core != row_tiles
    mask_rows = (row_tiles * block_rows != B) or need_clamp

    def in_map(c, i, j):
        blk = c * tiles_per_core + i
        if need_clamp:
            blk = jnp.minimum(blk, row_tiles - 1)     # dead tiles re-read last tile (masked)
        return (blk, j)

    kernel = functools.partial(
        _triplet_kernel,
        margin=float(margin),
        batch=B, feat=D,
        block_rows=block_rows, block_feat=block_feat,
        tiles_per_core=tiles_per_core,
        single_feat_tile=single_feat_tile,
        mask_rows=mask_rows, mask_cols=mask_cols,
    )

    cp_kwargs = dict(dimension_semantics=("parallel", "arbitrary", "arbitrary"))
    if vmem_limit is not None:
        cp_kwargs["vmem_limit_bytes"] = int(vmem_limit)

    in_spec = pl.BlockSpec((block_rows, block_feat), in_map)
    row_scratch_rows = block_rows if feat_tiles > 1 else 8   # unused dummy when 1 tile

    partials = pl.pallas_call(
        kernel,
        out_shape=jax.ShapeDtypeStruct((nc, 8, 128), jnp.float32),
        grid=(nc, tiles_per_core, feat_tiles),
        in_specs=[in_spec, in_spec, in_spec],
        out_specs=pl.BlockSpec((1, 8, 128), lambda c, i, j: (c, 0, 0)),
        scratch_shapes=[
            pltpu.VMEM((row_scratch_rows, 1), jnp.float32),  # per-row partial sums
            pltpu.VMEM((1, 1), jnp.float32),                 # per-core scalar accumulator
        ],
        compiler_params=pltpu.CompilerParams(**cp_kwargs),
    )(anchor, positive, negative)

    total = jnp.sum(partials[:, 0, 0])
    return total / jnp.float32(B) if size_average else total


def _reference(anchor, positive, negative, margin, size_average=True):
    a, p, n = (x.astype(jnp.float32) for x in (anchor, positive, negative))
    dp = jnp.sum((a - p) ** 2, axis=1)
    dn = jnp.sum((a - n) ** 2, axis=1)
    losses = jnp.maximum(dp - dn + margin, 0.0)
    return jnp.mean(losses) if size_average else jnp.sum(losses)


if __name__ == "__main__":
    margin = 1.0

    # 1) Small f32 batch, mean + sum reductions, auto tiling/core planning.
    k1, k2, k3 = jax.random.split(jax.random.PRNGKey(0), 3)
    a = jax.random.normal(k1, (8, 32), dtype=jnp.float32)
    p = jax.random.normal(k2, (8, 32), dtype=jnp.float32)
    n = jax.random.normal(k3, (8, 32), dtype=jnp.float32)
    out = jax.block_until_ready(naive_triplet_loss(a, p, n, margin, True))
    assert jnp.allclose(out, _reference(a, p, n, margin, True), atol=1e-5, rtol=1e-5)
    out_s = jax.block_until_ready(naive_triplet_loss(a, p, n, margin, False))
    assert jnp.allclose(out_s, _reference(a, p, n, margin, False), atol=1e-5, rtol=1e-5)

    # 2) Ragged batch + forced 2-core grid: per-core partials + partial-block row mask.
    ka, kp, kn = jax.random.split(jax.random.PRNGKey(1), 3)
    a2 = jax.random.normal(ka, (13, 32), dtype=jnp.float32)
    p2 = jax.random.normal(kp, (13, 32), dtype=jnp.float32)
    n2 = jax.random.normal(kn, (13, 32), dtype=jnp.float32)
    out2 = jax.block_until_ready(
        naive_triplet_loss(a2, p2, n2, margin, True, block_rows=8, num_cores=2))
    assert jnp.allclose(out2, _reference(a2, p2, n2, margin, True), atol=1e-5, rtol=1e-5)

    # 3) Feature tiling + dead-tile clamp: 3 row tiles on 2 cores, D=200 in 128-col tiles.
    ka, kp, kn = jax.random.split(jax.random.PRNGKey(2), 3)
    a3 = jax.random.normal(ka, (17, 200), dtype=jnp.float32)
    p3 = jax.random.normal(kp, (17, 200), dtype=jnp.float32)
    n3 = jax.random.normal(kn, (17, 200), dtype=jnp.float32)
    out3 = jax.block_until_ready(
        naive_triplet_loss(a3, p3, n3, margin, True,
                           block_rows=8, block_feat=128, num_cores=2))
    assert jnp.allclose(out3, _reference(a3, p3, n3, margin, True), atol=1e-3, rtol=1e-4)

    # 4) bf16 inputs (halves HBM traffic; kernel accumulates in f32).
    ka, kp, kn = jax.random.split(jax.random.PRNGKey(3), 3)
    a4 = jax.random.normal(ka, (16, 64), dtype=jnp.bfloat16)
    p4 = jax.random.normal(kp, (16, 64), dtype=jnp.bfloat16)
    n4 = jax.random.normal(kn, (16, 64), dtype=jnp.bfloat16)
    out4 = jax.block_until_ready(naive_triplet_loss(a4, p4, n4, margin, False))
    assert jnp.allclose(out4, _reference(a4, p4, n4, margin, False), atol=1e-3, rtol=1e-3)

    print("KERNEL_OK")
</pallas_src>

<mosaic_0001>
module attributes {stable_mosaic.version = 11 : i64} {
  func.func @_triplet_kernel(%arg0: i32, %arg1: i32, %arg2: i32, %arg3: memref<8x32xf32, #tpu.memory_space<vmem>>, %arg4: memref<8x32xf32, #tpu.memory_space<vmem>>, %arg5: memref<8x32xf32, #tpu.memory_space<vmem>>, %arg6: memref<1x8x128xf32, #tpu.memory_space<vmem>>, %arg7: memref<8x1xf32, #tpu.memory_space<vmem>>, %arg8: memref<1x1xf32, #tpu.memory_space<vmem>>) attributes {dimension_semantics = [#tpu.dimension_semantics<parallel>, #tpu.dimension_semantics<arbitrary>, #tpu.dimension_semantics<arbitrary>], iteration_bounds = array<i64: 1, 1, 1>, scalar_prefetch = 0 : i64, scratch_operands = 2 : i64, tpu.core_type = #tpu.core_type<tc>, window_params = [{transform_indices = @transform_0, window_bounds = array<i64: 8, 32>}, {transform_indices = @transform_1, window_bounds = array<i64: 8, 32>}, {transform_indices = @transform_2, window_bounds = array<i64: 8, 32>}, {transform_indices = @transform_3, window_bounds = array<i64: 1, 8, 128>}]} {
    %c0_i32 = arith.constant 0 : i32
    %0 = arith.cmpi eq, %arg1, %c0_i32 : i32
    %c0_i32_0 = arith.constant 0 : i32
    %1 = arith.cmpi eq, %arg2, %c0_i32_0 : i32
    %2 = arith.andi %0, %1 : i1
    %3 = arith.extui %2 : i1 to i32
    %c0_i32_1 = arith.constant 0 : i32
    %4 = arith.cmpi ne, %3, %c0_i32_1 : i32
    scf.if %4 {
      %cst_12 = arith.constant 0.000000e+00 : f32
      %23 = vector.broadcast %cst_12 : f32 to vector<1x1xf32>
      %c0_13 = arith.constant 0 : index
      %c0_14 = arith.constant 0 : index
      %24 = vector.load %arg8[%c0_13, %c0_14] : memref<1x1xf32, #tpu.memory_space<vmem>>, vector<1x1xf32>
      tpu.vector_store %arg8[%c0_13, %c0_14], %23 {strides = array<i32>} : memref<1x1xf32, #tpu.memory_space<vmem>>, vector<1x1xf32>,
    } else {
    }
    %c0 = arith.constant 0 : index
    %c0_2 = arith.constant 0 : index
    %5 = vector.load %arg3[%c0, %c0_2] : memref<8x32xf32, #tpu.memory_space<vmem>>, vector<8x32xf32>
    %c0_3 = arith.constant 0 : index
    %c0_4 = arith.constant 0 : index
    %6 = vector.load %arg4[%c0_3, %c0_4] : memref<8x32xf32, #tpu.memory_space<vmem>>, vector<8x32xf32>
    %c0_5 = arith.constant 0 : index
    %c0_6 = arith.constant 0 : index
    %7 = vector.load %arg5[%c0_5, %c0_6] : memref<8x32xf32, #tpu.memory_space<vmem>>, vector<8x32xf32>
    %8 = arith.subf %5, %6 : vector<8x32xf32>
    %9 = arith.mulf %8, %8 : vector<8x32xf32>
    %10 = arith.subf %5, %7 : vector<8x32xf32>
    %11 = arith.mulf %10, %10 : vector<8x32xf32>
    %12 = arith.subf %9, %11 : vector<8x32xf32>
    %cst = arith.constant dense<0.000000e+00> : vector<8xf32>
    %13 = vector.multi_reduction <add>, %12, %cst [1] : vector<8x32xf32> to vector<8xf32>
    %14 = vector.shape_cast %13 : vector<8xf32> to vector<8x1xf32>
    %c0_i32_7 = arith.constant 0 : i32
    %15 = arith.cmpi eq, %arg2, %c0_i32_7 : i32
    %16 = arith.extui %15 : i1 to i32
    %c0_i32_8 = arith.constant 0 : i32
    %17 = arith.cmpi ne, %16, %c0_i32_8 : i32
    scf.if %17 {
      %cst_12 = arith.constant 1.000000e+00 : f32
      %23 = vector.broadcast %cst_12 : f32 to vector<8x1xf32>
      %24 = arith.addf %14, %23 : vector<8x1xf32>
      %cst_13 = arith.constant 0.000000e+00 : f32
      %25 = vector.broadcast %cst_13 : f32 to vector<8x1xf32>
      %26 = arith.maximumf %24, %25 : vector<8x1xf32>
      %c0_14 = arith.constant 0 : index
      %c0_15 = arith.constant 0 : index
      %27 = vector.load %arg8[%c0_14, %c0_15] : memref<1x1xf32, #tpu.memory_space<vmem>>, vector<1x1xf32>
      %28 = vector.shape_cast %26 : vector<8x1xf32> to vector<1x8x1xf32>
      %cst_16 = arith.constant dense<0.000000e+00> : vector<1xf32>
      %29 = vector.multi_reduction <add>, %28, %cst_16 [1, 2] : vector<1x8x1xf32> to vector<1xf32>
      %30 = vector.shape_cast %29 : vector<1xf32> to vector<1x1x1xf32>
      %31 = vector.extract %30[0, 0, 0] : f32 from vector<1x1x1xf32>
      %32 = vector.broadcast %31 : f32 to vector<1x1xf32>
      %33 = arith.addf %27, %32 : vector<1x1xf32>
      %c0_17 = arith.constant 0 : index
      %c0_18 = arith.constant 0 : index
      %34 = vector.load %arg8[%c0_17, %c0_18] : memref<1x1xf32, #tpu.memory_space<vmem>>, vector<1x1xf32>
      tpu.vector_store %arg8[%c0_17, %c0_18], %33 {strides = array<i32>} : memref<1x1xf32, #tpu.memory_space<vmem>>, vector<1x1xf32>,
    } else {
    }
    %c0_i32_9 = arith.constant 0 : i32
    %18 = arith.cmpi eq, %arg1, %c0_i32_9 : i32
    %c0_i32_10 = arith.constant 0 : i32
    %19 = arith.cmpi eq, %arg2, %c0_i32_10 : i32
    %20 = arith.andi %18, %19 : i1
    %21 = arith.extui %20 : i1 to i32
    %c0_i32_11 = arith.constant 0 : i32
    %22 = arith.cmpi ne, %21, %c0_i32_11 : i32
    scf.if %22 {
      %c0_12 = arith.constant 0 : index
      %c0_13 = arith.constant 0 : index
      %23 = vector.load %arg8[%c0_12, %c0_13] : memref<1x1xf32, #tpu.memory_space<vmem>>, vector<1x1xf32>
      %24 = vector.extract %23[0, 0] : f32 from vector<1x1xf32>
      %25 = vector.broadcast %24 : f32 to vector<1x8x128xf32>
      %c0_14 = arith.constant 0 : index
      %c0_15 = arith.constant 0 : index
      %c0_16 = arith.constant 0 : index
      %26 = vector.load %arg6[%c0_14, %c0_15, %c0_16] : memref<1x8x128xf32, #tpu.memory_space<vmem>>, vector<1x8x128xf32>
      tpu.vector_store %arg6[%c0_14, %c0_15, %c0_16], %25 {strides = array<i32>} : memref<1x8x128xf32, #tpu.memory_space<vmem>>, vector<1x8x128xf32>,
    } else {
    }
    return
  }
  func.func @transform_0(%arg0: i32, %arg1: i32, %arg2: i32) -> (i32, i32) {
    %c1_i32 = arith.constant 1 : i32
    %0 = arith.muli %arg0, %c1_i32 : i32
    %1 = arith.addi %0, %arg1 : i32
    %c0_i32 = arith.constant 0 : i32
    return %1, %arg2 : i32, i32
  }
  func.func @transform_1(%arg0: i32, %arg1: i32, %arg2: i32) -> (i32, i32) {
    %c1_i32 = arith.constant 1 : i32
    %0 = arith.muli %arg0, %c1_i32 : i32
    %1 = arith.addi %0, %arg1 : i32
    %c0_i32 = arith.constant 0 : i32
    return %1, %arg2 : i32, i32
  }
  func.func @transform_2(%arg0: i32, %arg1: i32, %arg2: i32) -> (i32, i32) {
    %c1_i32 = arith.constant 1 : i32
    %0 = arith.muli %arg0, %c1_i32 : i32
    %1 = arith.addi %0, %arg1 : i32
    %c0_i32 = arith.constant 0 : i32
    return %1, %arg2 : i32, i32
  }
  func.func @transform_3(%arg0: i32, %arg1: i32, %arg2: i32) -> (i32, i32, i32) {
    %c0_i32 = arith.constant 0 : i32
    %c0_i32_0 = arith.constant 0 : i32
    %c0_i32_1 = arith.constant 0 : i32
    return %arg0, %c0_i32, %c0_i32_0 : i32, i32, i32
  }
}

</mosaic_0001>

<llo_original>
// kernel: tpu_custom_call.1
$region0: #{tpu_custom_call.1}
  #allocation0 [shape = 'u32[]', space=smem, size = 0x4, offset = 0x4, fixed_abs, tag = 'smem constant byte address 0x4 - core index']
  #allocation1 [shape = 'u32[144,128]{1,0:T(1,128)}', space=vmem, size = 0x12000, scoped, tag = 'internal scratch']
  #allocation2 [shape = 'f32[8,1]{1,0:T(8,128)}', space=vmem, size = 0x1000, scoped, tag = 'scratch operand']
  #allocation3 [shape = 'f32[1,1]{1,0:T(1,128)}', space=vmem, size = 0x200, scoped, tag = 'scratch operand']
  %s0 = inlined_call_operand.hbm [shape: f32[8,32], index: 0, kind: input, shape index: {}]
  %s1 = inlined_call_operand.hbm [shape: f32[8,32], index: 1, kind: input, shape index: {}]
  %s2 = inlined_call_operand.hbm [shape: f32[8,32], index: 2, kind: input, shape index: {}]
  %s3 = inlined_call_operand.hbm [shape: f32[1,8,128], index: 3, kind: output, shape index: {}]
  %s4 = sld [smem:[#allocation0]]
  $region46: #{tpu_custom_call.1} parent=0
    _
  %s6 = ssub.s32 1, %s4
  %s7 = scalar_select 0, %s6, %s4
  $region1: #{tpu_custom_call.1} parent=0
    #allocation4 [shape = 'u8[4096]{0}', space=vmem, size = 0x1000, scoped, tag = 'input window, operand 0, single buffered']
    #allocation5 [shape = 's32[1]{0}', space=sflag, size = 0x4, scoped, tag = 'scoped memory for tpu_custom_call.1']
    #allocation6 [shape = 's32[1]{0}', space=sflag, size = 0x4, scoped, tag = 'scoped memory for tpu_custom_call.1']
    #allocation7 [shape = 'u8[4096]{0}', space=vmem, size = 0x1000, scoped, tag = 'input window, operand 1, single buffered']
    #allocation8 [shape = 's32[1]{0}', space=sflag, size = 0x4, scoped, tag = 'scoped memory for tpu_custom_call.1']
    #allocation9 [shape = 'u8[4096]{0}', space=vmem, size = 0x1000, scoped, tag = 'input window, operand 2, single buffered']
    #allocation10 [shape = 'u8[4096]{0}', space=vmem, size = 0x1000, scoped, tag = 'output window, operand 0, single buffered']
    %8 = vsyncpa [#allocation5], 0
    %9 = vsyncpa [#allocation8], 0
    %10 = vsyncpa [#allocation6], 0
    // Predicated region
    $region2: #{tpu_custom_call.1} parent=1 // pred_check
      _
    $region3: #{tpu_custom_call.1} parent=1 // pred_check_branch
      %12 = sbr.rel (0) target = $region5
    $region4: #{tpu_custom_call.1} parent=1 // pred_region
      %s13 = sadd.s32 0, 0
      %s15 = ssub.s32 128, 128
      %16 = vsyncadd [#allocation5], %s15
      %s17 = smul.addr %s13, 128
      %s18 = scalar_lea.hbm %s0, %s17
      %s20 = sshll.u32 [#allocation4], 4
      %s21 = int_to_ptr.vmem [resolvable:$true] %s20
      %23 = dma.hbm_to_vmem [thread:$0]  %s18, 128, %s21, [#allocation5]
    $region5: #{tpu_custom_call.1} parent=1 // pred_fallthru
      _
    // Predicated region
    $region6: #{tpu_custom_call.1} parent=1 // pred_check
      _
    $region7: #{tpu_custom_call.1} parent=1 // pred_check_branch
      %25 = sbr.rel (0) target = $region9
    $region8: #{tpu_custom_call.1} parent=1 // pred_region
      %s26 = sadd.s32 0, 0
      %s28 = ssub.s32 128, 128
      %29 = vsyncadd [#allocation8], %s28
      %s30 = smul.addr %s26, 128
      %s31 = scalar_lea.hbm %s1, %s30
      %s33 = sshll.u32 [#allocation7], 4
      %s34 = int_to_ptr.vmem [resolvable:$true] %s33
      %36 = dma.hbm_to_vmem [thread:$0]  %s31, 128, %s34, [#allocation8]
    $region9: #{tpu_custom_call.1} parent=1 // pred_fallthru
      _
    // Predicated region
    $region10: #{tpu_custom_call.1} parent=1 // pred_check
      _
    $region11: #{tpu_custom_call.1} parent=1 // pred_check_branch
      %38 = sbr.rel (0) target = $region13
    $region12: #{tpu_custom_call.1} parent=1 // pred_region
      %s39 = sadd.s32 0, 0
      %s41 = ssub.s32 128, 128
      %42 = vsyncadd [#allocation8], %s41
      %s43 = smul.addr %s39, 128
      %s44 = scalar_lea.hbm %s2, %s43
      %s46 = sshll.u32 [#allocation9], 4
      %s47 = int_to_ptr.vmem [resolvable:$true] %s46
      %49 = dma.hbm_to_vmem [thread:$0]  %s44, 128, %s47, [#allocation8]
    $region13: #{tpu_custom_call.1} parent=1 // pred_fallthru
      _
    // Predicated region
    $region14: #{tpu_custom_call.1} parent=1 // pred_check
      _
    $region15: #{tpu_custom_call.1} parent=1 // pred_check_branch
      %51 = sbr.rel (0) target = $region17
    $region16: #{tpu_custom_call.1} parent=1 // pred_region
      %52 = dma.done [#allocation5], 128
    $region17: #{tpu_custom_call.1} parent=1 // pred_fallthru
      _
    // Predicated region
    $region18: #{tpu_custom_call.1} parent=1 // pred_check
      _
    $region19: #{tpu_custom_call.1} parent=1 // pred_check_branch
      %54 = sbr.rel (0) target = $region21
    $region20: #{tpu_custom_call.1} parent=1 // pred_region
      %55 = dma.done [#allocation8], 128
    $region21: #{tpu_custom_call.1} parent=1 // pred_fallthru
      _
    // Predicated region
    $region22: #{tpu_custom_call.1} parent=1 // pred_check
      _
    $region23: #{tpu_custom_call.1} parent=1 // pred_check_branch
      %57 = sbr.rel (0) target = $region25
    $region24: #{tpu_custom_call.1} parent=1 // pred_region
      %58 = dma.done [#allocation8], 128
    $region25: #{tpu_custom_call.1} parent=1 // pred_fallthru
      _
    %s59 = sadd.s32 0, 0
    %s60 = sadd.s32 0, 0
    %s61 = sadd.s32 0, 0
    %p62 = scmp.eq.s32.totalorder 0, 0
    %p63 = scmp.eq.s32.totalorder 0, 0
    %p64 = pnand %p62, %p63
    %p65 = pneg %p64
    // Predicated region
    $region26: #{tpu_custom_call.1} parent=1 // pred_check
      _
    $region27: #{tpu_custom_call.1} parent=1 // pred_check_branch
      %67 = sbr.rel (%p64) target = $region29
    $region28: #{tpu_custom_call.1} parent=1 // pred_region
      %vm68 = vcmask 0
      %69 = vst.msk [vmem:[#allocation3] sm:$0x1] %vm68, 0.0
    $region29: #{tpu_custom_call.1} parent=1 // pred_fallthru
      _
    %v70 = vld [vmem:[#allocation4] sm:$0xff]
    %v71 = vld [vmem:[#allocation7] sm:$0xff]
    %v72 = vld [vmem:[#allocation9] sm:$0xff]
    %v73 = vsub.f32 %v70, %v71
    %v74 = vmul.f32 %v73, %v73
    %v75 = vsub.f32 %v70, %v72
    %v76 = vmul.f32 %v75, %v75
    %v77 = vsub.f32 %v74, %v76
    %vm78 = vcmask 261120
    %v79 = vsel %vm78, %v77, 0.0
    %80 = vadd.xlane.f32.xlu0 %v79
    %v81 = vpop.xlane.xlu0 %80
    // Predicated region
    $region30: #{tpu_custom_call.1} parent=1 // pred_check
      %p82 = pneg %p63
    $region31: #{tpu_custom_call.1} parent=1 // pred_check_branch
      %84 = sbr.rel (%p82) target = $region33
    $region32: #{tpu_custom_call.1} parent=1 // pred_region
      %v85 = vadd.f32 %v81, 1.0
      %v86 = vmax.f32 %v85, 0.0
      %v87 = vld [vmem:[#allocation3] sm:$0x1]
      %vm88 = vcmask 7168
      %v89 = vsel %vm88, %v86, 0.0
      %90 = vadd.xlane.f32.xlu0 %v89
      %v91 = vpop.xlane.xlu0 %90
      %v92 = vrot.slane %v91, 4
      %v93 = vadd.f32 %v91, %v92
      %v94 = vrot.slane %v93, 2
      %v95 = vadd.f32 %v93, %v94
      %v96 = vrot.slane %v95, 1
      %v97 = vadd.f32 %v95, %v96
      %s98 = vtos %v97
      %v99 = vstv %s98
      %v100 = vadd.f32 %v87, %v99
      %vm101 = vcmask 0
      %102 = vst.msk [vmem:[#allocation3] sm:$0x1] %vm101, %v100
    $region33: #{tpu_custom_call.1} parent=1 // pred_fallthru
      _
    // Predicated region
    $region34: #{tpu_custom_call.1} parent=1 // pred_check
      _
    $region35: #{tpu_custom_call.1} parent=1 // pred_check_branch
      %104 = sbr.rel (%p64) target = $region37
    $region36: #{tpu_custom_call.1} parent=1 // pred_region
      %v105 = vld [vmem:[#allocation3] sm:$0x1]
      %s106 = vtos %v105
      %v107 = vstv %s106
      %108 = vst [vmem:[#allocation10] sm:$0xff] %v107
    $region37: #{tpu_custom_call.1} parent=1 // pred_fallthru
      _
    // Predicated region
    $region38: #{tpu_custom_call.1} parent=1 // pred_check
      _
    $region39: #{tpu_custom_call.1} parent=1 // pred_check_branch
      %110 = sbr.rel (0) target = $region41
    $region40: #{tpu_custom_call.1} parent=1 // pred_region
      %s112 = ssub.s32 128, 128
      %113 = vsyncadd [#allocation6], %s112
      %s115 = sshll.u32 [#allocation10], 4
      %s116 = int_to_ptr.vmem [resolvable:$true] %s115
      %118 = dma.vmem_to_hbm [thread:$0]  %s116, 128, %s3, [#allocation6]
    $region41: #{tpu_custom_call.1} parent=1 // pred_fallthru
      _
    // Predicated region
    $region42: #{tpu_custom_call.1} parent=1 // pred_check
      _
    $region43: #{tpu_custom_call.1} parent=1 // pred_check_branch
      %120 = sbr.rel (0) target = $region45
    $region44: #{tpu_custom_call.1} parent=1 // pred_region
      %121 = dma.done [#allocation6], 128
    $region45: #{tpu_custom_call.1} parent=1 // pred_fallthru
      _
    %122 = vsyncpa [#allocation5], 1
    %123 = vsyncpa [#allocation8], 1
    %124 = vsyncpa [#allocation6], 1

</llo_original>
